<compile_context>
chip_gen: v7x
topology: tpu7x:2x2x1
jax: 0.10.0
libtpu: 0.0.40
codegen_flags: <defaults>
</compile_context>

<pallas_src>
import functools
import math

import numpy as np
import jax
import jax.numpy as jnp
from jax import lax
from jax.experimental import pallas as pl
from jax.experimental.pallas import tpu as pltpu


# --------------------------- small helpers ----------------------------------

def _round_up(x, m):
    return (x + m - 1) // m * m


def _pick_rows(h, wp8, target=512):
    """Smallest divisor r of h with r * wp8 >= target (else h): sets the MXU M-dim."""
    for r in range(1, h + 1):
        if h % r == 0 and r * wp8 >= target:
            return r
    return h


def _pick_pool_rows(total_rows, row_bytes, budget=2 << 20):
    """Largest divisor of total_rows whose input block stays under `budget` bytes."""
    cap = max(1, budget // max(1, row_bytes))
    best = 1
    for d in range(1, total_rows + 1):
        if total_rows % d == 0 and d <= cap:
            best = d
    return best


_ROLL_FWD = None


def _roll_matches_jnp():
    """One-off probe: True if pltpu.roll(+shift) moves elements to HIGHER indices
    (jnp.roll convention).  Guards the dx-alignment rotates in the conv kernel."""
    global _ROLL_FWD
    if _ROLL_FWD is None:
        def k(x_ref, o_ref):
            o_ref[...] = pltpu.roll(x_ref[...], shift=1, axis=0)

        x = jnp.arange(8 * 128, dtype=jnp.float32).reshape(8, 128)
        y = pl.pallas_call(k, out_shape=jax.ShapeDtypeStruct((8, 128), jnp.float32))(x)
        _ROLL_FWD = bool(jnp.array_equal(y[1], x[0]))
    return _ROLL_FWD


# --------------------------- Pallas kernels ---------------------------------

def _conv_kernel(x_ref, w_ref, b_ref, *o_refs, r, w, wp8, k3, roll_fwd, mode):
    """Fused-im2col conv for one (image, row-block, cout-block) grid step.

    k3=True  (3x3, pad 1): x_ref is the whole padded image (1, H+2, Wp8, Cin).
        The dy taps are folded into K (lhs = (R*Wp8, 3*Cin)); the dx taps become
        three MXU matmuls whose f32 products are aligned with an XLU sublane roll.
    k3=False (layer-0 im2col'd 1x1): x_ref is the (1, R, Wp8, K) row block; one matmul.

    o_refs: (1, R, W, TN) blocks.
        'relu'  -> [relu(conv)]  bf16   (feeds next layer)
        'plain' -> [conv]        f32    (layer 28, end of network)
        'dual'  -> [conv f32 feature, relu(conv) bf16 next-layer activation]
    """
    tn = w_ref.shape[-1]
    if k3:
        cin = x_ref.shape[-1]
        y0 = pl.multiple_of(pl.program_id(1) * r, r)
        slab = x_ref[0, pl.ds(y0, r + 2), :, :]                     # (r+2, wp8, cin)
        # dy-fold: K = 3*Cin, built from cheap leading-dim slices + a lane concat.
        lhs = jnp.concatenate([slab[0:r], slab[1:r + 1], slab[2:r + 2]], axis=-1)
        lhs = lhs.reshape(r * wp8, 3 * cin)                         # layout-free (wp8 % 8 == 0)
    else:
        lhs = x_ref[0].reshape(r * wp8, x_ref.shape[-1])
    m = r * wp8

    acc = jnp.dot(lhs, w_ref[0], preferred_element_type=jnp.float32)
    if k3:
        for dx in (1, 2):
            p = jnp.dot(lhs, w_ref[dx], preferred_element_type=jnp.float32)
            # output column x needs this tap's value at column x+dx: rotate by -dx.
            shift = (m - dx) if roll_fwd else dx
            acc = acc + pltpu.roll(p, shift=shift, axis=0)

    acc = acc + b_ref[...]                                          # (m, tn) + (1, tn), f32
    out = acc.reshape(r, wp8, tn)[:, :w, :]                         # drop the pad columns
    if mode == "dual":
        o_refs[0][0] = out.astype(o_refs[0].dtype)                  # pre-ReLU feature (f32)
        o_refs[1][0] = jnp.maximum(out, 0.0).astype(o_refs[1].dtype)
    elif mode == "relu":
        o_refs[0][0] = jnp.maximum(out, 0.0).astype(o_refs[0].dtype)
    else:  # plain
        o_refs[0][0] = out.astype(o_refs[0].dtype)


def _maxpool_kernel(x_ref, o_ref, *, c):
    """Fused 2x2 / stride-2 max pool for one row block.

    x_ref : (rp, 2, wo, 2*C)  -- row pairs on axis 1, column pairs packed into lanes
    o_ref : (rp, wo, C)
    """
    z = x_ref[...]
    m = jnp.maximum(z[:, 0], z[:, 1])                 # reduce the row pair
    o_ref[...] = jnp.maximum(m[..., :c], m[..., c:])  # reduce the column pair


# --------------------------- layer ops (NHWC) --------------------------------

def _conv(x, w_fold, b2, mode):
    """3x3 (stride 1, pad 1) conv -- or the im2col'd layer-0 matmul (kw == 1).

    x      : (N, H, W, Cin) bf16 NHWC.
    w_fold : (3, 3*Cin, Cout) bf16  (dx-major, dy folded into K)   or (1, K, Cout).
    b2     : (1, Cout) f32.
    """
    n, h, w, cin = x.shape
    kw, kfold, cout = w_fold.shape
    k3 = (kw == 3)
    roll_fwd = _roll_matches_jnp()

    if k3:
        wp8 = _round_up(w + 2, 8)                       # pad width so reshapes are layout-free
        xp = jnp.pad(x, ((0, 0), (1, 1), (1, wp8 - w - 1), (0, 0)))
        r = _pick_rows(h, wp8)
        # whole padded image resident per n (halo rows indexed in-kernel).
        x_spec = pl.BlockSpec((1, h + 2, wp8, cin), lambda bi, i, j: (bi, 0, 0, 0))
    else:
        wp8 = _round_up(w, 8)
        xp = jnp.pad(x, ((0, 0), (0, 0), (0, wp8 - w), (0, 0))) if wp8 != w else x
        r = _pick_rows(h, wp8)
        x_spec = pl.BlockSpec((1, r, wp8, cin), lambda bi, i, j: (bi, i, 0, 0))

    tn = 256 if cout > 256 else cout                    # Cout tiling for the 512-channel convs
    grid = (n, h // r, cout // tn)

    ospec = pl.BlockSpec((1, r, w, tn), lambda bi, i, j: (bi, i, 0, j))
    feat = jax.ShapeDtypeStruct((n, h, w, cout), jnp.float32)
    act = jax.ShapeDtypeStruct((n, h, w, cout), jnp.bfloat16)
    if mode == "dual":
        out_shape, out_specs, out_b = (feat, act), (ospec, ospec), 6
    elif mode == "relu":
        out_shape, out_specs, out_b = act, ospec, 2
    else:  # plain
        out_shape, out_specs, out_b = feat, ospec, 4

    # explicit scoped-VMEM budget: blocks (double-buffered) + in-kernel temporaries.
    x_block = (h + 2 if k3 else r) * wp8 * cin * 2
    w_block = kw * kfold * tn * 2
    o_block = r * w * tn * out_b
    temps = (r + 2) * wp8 * cin * 2 + r * wp8 * kfold * 2 + 3 * r * wp8 * tn * 4
    need = 2 * (x_block + w_block + tn * 4 + o_block) + temps
    vmem_limit = int(min(128 * 2 ** 20, max(32 * 2 ** 20, 2 * need)))

    cost = pl.CostEstimate(
        flops=2 * n * h * w * cout * kw * kfold,
        transcendentals=0,
        bytes_accessed=int(xp.size * 2 + w_fold.size * 2 + b2.size * 4
                           + n * h * w * cout * out_b))

    return pl.pallas_call(
        functools.partial(_conv_kernel, r=r, w=w, wp8=wp8, k3=k3,
                          roll_fwd=roll_fwd, mode=mode),
        out_shape=out_shape,
        grid=grid,
        in_specs=[x_spec,
                  pl.BlockSpec((kw, kfold, tn), lambda bi, i, j: (0, 0, j)),
                  pl.BlockSpec((1, tn), lambda bi, i, j: (0, j))],
        out_specs=out_specs,
        compiler_params=pltpu.CompilerParams(
            dimension_semantics=("parallel", "parallel", "arbitrary"),
            vmem_limit_bytes=vmem_limit),
        cost_estimate=cost,
    )(xp, w_fold, b2)


def _maxpool2(x):
    """2x2 max pool, stride 2 (floor mode, like nn.MaxPool2d(2, 2)), row-block tiled."""
    n, h, w, c = x.shape
    ho, wo = h // 2, w // 2
    x = x[:, :2 * ho, :2 * wo, :]                       # floor mode (no-op for even H/W)
    xr = x.reshape(n * ho, 2, wo, 2 * c)                # metadata-only repacking of the taps
    rows = n * ho
    rp = _pick_pool_rows(rows, 2 * wo * 2 * c * x.dtype.itemsize)
    out = pl.pallas_call(
        functools.partial(_maxpool_kernel, c=c),
        out_shape=jax.ShapeDtypeStruct((rows, wo, c), x.dtype),
        grid=(rows // rp,),
        in_specs=[pl.BlockSpec((rp, 2, wo, 2 * c), lambda i: (i, 0, 0, 0))],
        out_specs=pl.BlockSpec((rp, wo, c), lambda i: (i, 0, 0)),
        compiler_params=pltpu.CompilerParams(dimension_semantics=("parallel",)),
    )(xr)
    return out.reshape(n, ho, wo, c)


def _im2col_3x3(x):
    """(N,H,W,C) -> (N,H,W,9C), channel order (dy, dx, c).  Used only for layer 0 so
    its 3-wide minor dim never reaches VMEM (it would pad to 128 lanes there)."""
    n, h, w, c = x.shape
    xp = jnp.pad(x, ((0, 0), (1, 1), (1, 1), (0, 0)))
    cols = [xp[:, dy:dy + h, dx:dx + w, :] for dy in range(3) for dx in range(3)]
    return jnp.concatenate(cols, axis=-1)


# --------------------------- VGG19 features[:29] -----------------------------

def _build_cfg():
    cfg = []

    def block(cin, cout, n_conv):
        ch = cin
        for _ in range(n_conv):
            cfg.append(('conv', ch, cout))
            cfg.append(('relu',))
            ch = cout
        cfg.append(('pool',))

    block(3, 64, 2)        # layers 0-4
    block(64, 128, 2)      # layers 5-9
    block(128, 256, 4)     # layers 10-18
    block(256, 512, 4)     # layers 19-27
    cfg.append(('conv', 512, 512))   # layer 28
    return cfg


_VGG19_CFG = _build_cfg()
assert len(_VGG19_CFG) == 29
_CHOSEN = {0, 5, 10, 19, 28}         # conv1_1, conv2_1, conv3_1, conv4_1, conv5_1


def init_params(key):
    """He-style stand-ins in the PyTorch OIHW layout.
    TODO(synk): torchvision pretrained VGG19 weights are not loadable here."""
    params = {}
    for idx, layer in enumerate(_VGG19_CFG):
        if layer[0] == 'conv':
            _, cin, cout = layer
            key, wk, bk = jax.random.split(key, 3)
            std = math.sqrt(2.0 / (cin * 9))
            wgt = jax.random.normal(wk, (cout, cin, 3, 3), jnp.float32) * std
            bias = jax.random.normal(bk, (cout,), jnp.float32) * 0.01
            params[idx] = (wgt, bias)
    return params


def prepare_params(raw):
    """One-time fold/cast to the kernel layout (no per-forward transposes):
    (3, 3*Cin, Cout) bf16 (dx-major, dy folded into K) and (1, Cout) f32 bias.
    Layer 0 is fully folded ((1, 27, Cout)) to match its im2col'd input."""
    out = {}
    for idx, (wgt, bias) in raw.items():
        cout, cin = wgt.shape[0], wgt.shape[1]
        if idx == 0:
            wf = jnp.transpose(wgt, (2, 3, 1, 0)).reshape(1, 9 * cin, cout)
        else:
            wf = jnp.transpose(wgt, (3, 2, 1, 0)).reshape(3, 3 * cin, cout)
        out[idx] = (wf.astype(jnp.bfloat16),
                    bias.reshape(1, cout).astype(jnp.float32))
    return out


def _to_nchw(x_nhwc):
    return jnp.transpose(x_nhwc, (0, 3, 1, 2))


def vgg_forward(x_nchw, params):
    """Matches VGG.forward: returns the 5 chosen feature maps (NCHW f32, pre-ReLU convs)."""
    x = jnp.transpose(x_nchw, (0, 2, 3, 1)).astype(jnp.bfloat16)   # NCHW -> NHWC bf16
    features = []
    idx = 0
    while idx < len(_VGG19_CFG):
        kind = _VGG19_CFG[idx][0]
        if kind == 'conv':
            w, b = params[idx]
            x_in = _im2col_3x3(x) if idx == 0 else x
            fused_relu = (idx + 1 < len(_VGG19_CFG)
                          and _VGG19_CFG[idx + 1][0] == 'relu')
            if idx in _CHOSEN and fused_relu:
                pre, x = _conv(x_in, w, b, mode="dual")            # chosen feature is pre-ReLU
                features.append(_to_nchw(pre))
            elif fused_relu:
                x = _conv(x_in, w, b, mode="relu")
            else:
                x = _conv(x_in, w, b, mode="plain")                # layer 28: no trailing ReLU
                if idx in _CHOSEN:
                    features.append(_to_nchw(x))
            idx += 2 if fused_relu else 1
        elif kind == 'pool':
            x = _maxpool2(x)
            idx += 1
        else:
            raise AssertionError("standalone ReLU should have been fused into its conv")
    return features


def vgg_forward_ref(x_nchw, raw_params):
    """Pure-JAX (XLA conv/pool) reference with the same bf16 activation carry."""
    x = jnp.transpose(x_nchw, (0, 2, 3, 1)).astype(jnp.bfloat16)
    features = []
    for idx, layer in enumerate(_VGG19_CFG):
        kind = layer[0]
        if kind == 'conv':
            wgt, bias = raw_params[idx]
            y = lax.conv_general_dilated(
                x.astype(jnp.bfloat16), wgt.astype(jnp.bfloat16),
                window_strides=(1, 1), padding=((1, 1), (1, 1)),
                dimension_numbers=('NHWC', 'OIHW', 'NHWC'),
                preferred_element_type=jnp.float32) + bias[None, None, None, :]
            if idx in _CHOSEN:
                features.append(_to_nchw(y))
            x = y
        elif kind == 'relu':
            x = jnp.maximum(x, 0.0).astype(jnp.bfloat16)
        else:  # pool
            x = jnp.maximum(
                jnp.maximum(x[:, 0::2, 0::2, :], x[:, 1::2, 0::2, :]),
                jnp.maximum(x[:, 0::2, 1::2, :], x[:, 1::2, 1::2, :]))
    return features


if __name__ == "__main__":
    key = jax.random.PRNGKey(0)
    kx, kp = jax.random.split(key)
    x = jax.random.normal(kx, (2, 3, 16, 16), jnp.float32)   # NCHW, like PyTorch

    raw = init_params(kp)
    params = prepare_params(raw)        # one-time weight fold/cast (outside the forward)
    _roll_matches_jnp()                 # warm the pltpu.roll convention probe

    feats = jax.jit(vgg_forward)(x, params)
    feats = jax.block_until_ready(feats)

    expected = [(2, 64, 16, 16), (2, 128, 8, 8), (2, 256, 4, 4),
                (2, 512, 2, 2), (2, 512, 1, 1)]
    assert [tuple(f.shape) for f in feats] == expected
    assert all(f.dtype == jnp.float32 for f in feats)

    # numerical check against a pure-JAX reference (same bf16 carry, loose tolerance
    # for f32 accumulation-order / bf16 rounding drift over 16 conv layers).
    ref = jax.block_until_ready(jax.jit(vgg_forward_ref)(x, raw))
    for i, (a, r_) in enumerate(zip(feats, ref)):
        a = np.asarray(a, np.float32)
        r_ = np.asarray(r_, np.float32)
        scale = float(np.max(np.abs(r_))) + 1e-6
        err = float(np.max(np.abs(a - r_)))
        assert err <= 0.05 * scale + 1e-3, (i, err, scale)

    print("KERNEL_OK")
</pallas_src>

<mosaic_0001>
module attributes {stable_mosaic.version = 11 : i64} {
  func.func @k(%arg0: memref<8x128xf32, #tpu.memory_space<vmem>>, %arg1: memref<8x128xf32, #tpu.memory_space<vmem>>) attributes {dimension_semantics = [], scalar_prefetch = 0 : i64, scratch_operands = 0 : i64, tpu.core_type = #tpu.core_type<tc>} {
    %c0 = arith.constant 0 : index
    %c0_0 = arith.constant 0 : index
    %0 = vector.load %arg0[%c0, %c0_0] : memref<8x128xf32, #tpu.memory_space<vmem>>, vector<8x128xf32>
    %c1_i32 = arith.constant 1 : i32
    %1 = tpu.dynamic_rotate %0 by %c1_i32 dim 0 : vector<8x128xf32>, i32 -> vector<8x128xf32>
    %c0_1 = arith.constant 0 : index
    %c0_2 = arith.constant 0 : index
    %2 = vector.load %arg1[%c0_1, %c0_2] : memref<8x128xf32, #tpu.memory_space<vmem>>, vector<8x128xf32>
    tpu.vector_store %arg1[%c0_1, %c0_2], %1 {strides = array<i32>} : memref<8x128xf32, #tpu.memory_space<vmem>>, vector<8x128xf32>,
    return
  }
}

</mosaic_0001>

<llo_original>
// kernel: tpu_custom_call.1
$region0: #{tpu_custom_call.1}
  #allocation0 [shape = 'u32[]', space=smem, size = 0x4, offset = 0x4, fixed_abs, tag = 'smem constant byte address 0x4 - core index']
  #allocation1 [shape = 'u32[144,128]{1,0:T(1,128)}', space=vmem, size = 0x12000, scoped, tag = 'internal scratch']
  %s0 = inlined_call_operand.hbm [shape: f32[8,128], index: 0, kind: input, shape index: {}]
  %s1 = inlined_call_operand.hbm [shape: f32[8,128], index: 1, kind: output, shape index: {}]
  %s2 = sld [smem:[#allocation0]]
  $region18: #{tpu_custom_call.1} parent=0
    _
  %s4 = ssub.s32 1, %s2
  %s5 = scalar_select 0, %s4, %s2
  $region1: #{tpu_custom_call.1} parent=0
    #allocation2 [shape = 'u8[4096]{0}', space=vmem, size = 0x1000, scoped, tag = 'input window, operand 0, single buffered']
    #allocation3 [shape = 's32[1]{0}', space=sflag, size = 0x4, scoped, tag = 'scoped memory for tpu_custom_call.1']
    #allocation4 [shape = 's32[1]{0}', space=sflag, size = 0x4, scoped, tag = 'scoped memory for tpu_custom_call.1']
    #allocation5 [shape = 'u8[4096]{0}', space=vmem, size = 0x1000, scoped, tag = 'output window, operand 0, single buffered']
    %6 = vsyncpa [#allocation3], 0
    %7 = vsyncpa [#allocation4], 0
    // Predicated region
    $region2: #{tpu_custom_call.1} parent=1 // pred_check
      _
    $region3: #{tpu_custom_call.1} parent=1 // pred_check_branch
      %9 = sbr.rel (0) target = $region5
    $region4: #{tpu_custom_call.1} parent=1 // pred_region
      %s11 = ssub.s32 128, 128
      %12 = vsyncadd [#allocation3], %s11
      %s14 = sshll.u32 [#allocation2], 4
      %s15 = int_to_ptr.vmem [resolvable:$true] %s14
      %17 = dma.hbm_to_vmem [thread:$0]  %s0, 128, %s15, [#allocation3]
    $region5: #{tpu_custom_call.1} parent=1 // pred_fallthru
      _
    // Predicated region
    $region6: #{tpu_custom_call.1} parent=1 // pred_check
      _
    $region7: #{tpu_custom_call.1} parent=1 // pred_check_branch
      %19 = sbr.rel (0) target = $region9
    $region8: #{tpu_custom_call.1} parent=1 // pred_region
      %20 = dma.done [#allocation3], 128
    $region9: #{tpu_custom_call.1} parent=1 // pred_fallthru
      _
    %v21 = vld [vmem:[#allocation2] sm:$0xff]
    %v22 = vrot.slane %v21, 7
    %23 = vst [vmem:[#allocation5] sm:$0xff] %v22
    // Predicated region
    $region10: #{tpu_custom_call.1} parent=1 // pred_check
      _
    $region11: #{tpu_custom_call.1} parent=1 // pred_check_branch
      %25 = sbr.rel (0) target = $region13
    $region12: #{tpu_custom_call.1} parent=1 // pred_region
      %s27 = ssub.s32 128, 128
      %28 = vsyncadd [#allocation4], %s27
      %s30 = sshll.u32 [#allocation5], 4
      %s31 = int_to_ptr.vmem [resolvable:$true] %s30
      %33 = dma.vmem_to_hbm [thread:$0]  %s31, 128, %s1, [#allocation4]
    $region13: #{tpu_custom_call.1} parent=1 // pred_fallthru
      _
    // Predicated region
    $region14: #{tpu_custom_call.1} parent=1 // pred_check
      _
    $region15: #{tpu_custom_call.1} parent=1 // pred_check_branch
      %35 = sbr.rel (0) target = $region17
    $region16: #{tpu_custom_call.1} parent=1 // pred_region
      %36 = dma.done [#allocation4], 128
    $region17: #{tpu_custom_call.1} parent=1 // pred_fallthru
      _
    %37 = vsyncpa [#allocation3], 1
    %38 = vsyncpa [#allocation4], 1

</llo_original>
